<compile_context>
chip_gen: v7x
topology: tpu7x:2x2x1
jax: 0.10.0
libtpu: 0.0.40
codegen_flags: <defaults>
</compile_context>

<pallas_src>
import functools

import jax
import jax.numpy as jnp
from jax import lax
from jax.experimental import pallas as pl
from jax.experimental.pallas import tpu as pltpu

EPS = 1e-6

_VMEM = pl.BlockSpec(memory_space=pltpu.MemorySpace.VMEM)


# ---------------------------------------------------------------------------
# Hardware-aware budgets
# ---------------------------------------------------------------------------
def _tpu_vmem_capacity_bytes():
    try:
        return int(pltpu.get_tpu_info().vmem_capacity_bytes)
    except Exception:
        return 64 << 20  # conservative fallback (v7x per-TC VMEM)


def _vmem_limit_bytes(*arrays):
    need = sum(int(a.size) * a.dtype.itemsize for a in arrays)
    cap = _tpu_vmem_capacity_bytes()
    hi = min((cap * 3) // 4, 100 << 20)          # ~48 MiB on v7x, ~96 MiB on v5e/v6e
    return int(min(max(4 * need + (2 << 20), 16 << 20), hi))


# ---------------------------------------------------------------------------
# In-kernel helpers (f32 compute)
# ---------------------------------------------------------------------------
def _rmsnorm(y, g):
    # y: (R, D) f32 ; g: (1, D) f32.  sum * (1/D) instead of mean (no vector divide).
    inv_dim = 1.0 / y.shape[-1]
    ms = jnp.sum(y * y, axis=-1, keepdims=True) * inv_dim
    return y * lax.rsqrt(ms + EPS) * g


def _rmsnorm_prelu(y, g, alpha):
    out = _rmsnorm(y, g)
    return jnp.where(out >= 0, out, alpha * out)


# ---------------------------------------------------------------------------
# Standalone RMSNorm kernel (the spec module), row-tiled
# ---------------------------------------------------------------------------
def rmsnorm_kernel(x_ref, w_ref, o_ref):
    x = x_ref[...].astype(jnp.float32)
    w = w_ref[...].astype(jnp.float32)
    o_ref[...] = _rmsnorm(x, w).astype(o_ref.dtype)


def _rmsnorm_row_tile_and_vmem(n_rows, dim, x_itemsize, o_itemsize):
    cap = _tpu_vmem_capacity_bytes()
    vmem_limit = int(min((cap * 3) // 4, 100 << 20))
    # double-buffered in + out tiles plus f32 compute headroom per row
    per_row = dim * (2 * (x_itemsize + o_itemsize) + 8)
    tr = max(8, min(1024, (vmem_limit // 2) // max(per_row, 1)))
    if tr >= n_rows:
        return n_rows, vmem_limit
    return max(8, (tr // 8) * 8), vmem_limit


@functools.partial(jax.jit, static_argnames=("row_tile",))
def rmsnorm_forward(x, weight, row_tile=None):
    # x: (S, D) f32 or bf16; weight: (D,).  Compute in f32, output in x.dtype.
    S, D = x.shape
    w2 = weight.reshape(1, D)
    tr, vmem_limit = _rmsnorm_row_tile_and_vmem(
        S, D, x.dtype.itemsize, x.dtype.itemsize)
    if row_tile is not None:
        tr = min(int(row_tile), S)
    grid = (pl.cdiv(S, tr),)
    return pl.pallas_call(
        rmsnorm_kernel,
        out_shape=jax.ShapeDtypeStruct((S, D), x.dtype),
        grid=grid,
        in_specs=[pl.BlockSpec((tr, D), lambda i: (i, 0)),
                  pl.BlockSpec((1, D), lambda i: (0, 0))],
        out_specs=pl.BlockSpec((tr, D), lambda i: (i, 0)),
        compiler_params=pltpu.CompilerParams(
            dimension_semantics=("parallel",),
            vmem_limit_bytes=vmem_limit),
    )(x, w2)


# ---------------------------------------------------------------------------
# Fused TXT_GRU kernel: Linear+RMSNorm+PReLU -> L-layer GRU -> residual
#                       -> Linear+RMSNorm+PReLU -> residual
# ---------------------------------------------------------------------------
def txt_gru_kernel(x_ref, w_fc_ref, b_fc_ref, g_fc_ref, a_fc_ref,
                   wih_ref, whh_ref, bih_ref, bhh_ref,
                   w_reg_ref, b_reg_ref, g_reg_ref, a_reg_ref,
                   o_ref):
    S = x_ref.shape[0]
    L = wih_ref.shape[0]

    # ---- fc: Linear + RMSNorm + PReLU (stays in VMEM/vregs) ----
    y = jnp.dot(x_ref[...], w_fc_ref[...],
                preferred_element_type=jnp.float32) + b_fc_ref[...]
    m = _rmsnorm_prelu(y, g_fc_ref[...], a_fc_ref[...])          # (S, H)

    # ---- multi-layer GRU, fully unrolled; gate-major weights (r, z, n) ----
    seq = m
    for l in range(L):                                            # static layer loop
        wih_r, wih_z, wih_n = wih_ref[l, 0, :, :], wih_ref[l, 1, :, :], wih_ref[l, 2, :, :]
        whh_r, whh_z, whh_n = whh_ref[l, 0, :, :], whh_ref[l, 1, :, :], whh_ref[l, 2, :, :]
        bih_r, bih_z, bih_n = bih_ref[l, 0, :, :], bih_ref[l, 1, :, :], bih_ref[l, 2, :, :]
        bhh_r, bhh_z, bhh_n = bhh_ref[l, 0, :, :], bhh_ref[l, 1, :, :], bhh_ref[l, 2, :, :]

        # Hoisted input projections: (S,H)x(H,H) per gate, bias folded in.
        gi_r = jnp.dot(seq, wih_r, preferred_element_type=jnp.float32) + bih_r
        gi_z = jnp.dot(seq, wih_z, preferred_element_type=jnp.float32) + bih_z
        gi_n = jnp.dot(seq, wih_n, preferred_element_type=jnp.float32) + bih_n

        h = None
        rows = []
        for t in range(S):                                        # static, unrolled
            if t == 0:                                            # h0 == 0
                gh_r, gh_z, gh_n = bhh_r, bhh_z, bhh_n
            else:
                gh_r = jnp.dot(h, whh_r, preferred_element_type=jnp.float32) + bhh_r
                gh_z = jnp.dot(h, whh_z, preferred_element_type=jnp.float32) + bhh_z
                gh_n = jnp.dot(h, whh_n, preferred_element_type=jnp.float32) + bhh_n
            # One EUP sigmoid pass for both r and z (stacked along sublanes).
            pre_rz = jnp.concatenate([gi_r[t:t + 1, :] + gh_r,
                                      gi_z[t:t + 1, :] + gh_z], axis=0)   # (2, H)
            rz = jax.nn.sigmoid(pre_rz)
            r = rz[0:1, :]
            z = rz[1:2, :]
            n = jnp.tanh(gi_n[t:t + 1, :] + r * gh_n)
            if t == 0:
                h = (1.0 - z) * n
            else:
                h = (1.0 - z) * n + z * h
            rows.append(h)
        # One coalesced (S, H) formation per layer.
        seq = jnp.concatenate(rows, axis=0)

    # ---- reg: residual + Linear + RMSNorm + PReLU + residual ----
    p = seq + m
    y2 = jnp.dot(p, w_reg_ref[...],
                 preferred_element_type=jnp.float32) + b_reg_ref[...]
    o_ref[...] = _rmsnorm_prelu(y2, g_reg_ref[...], a_reg_ref[...]) + m


@jax.jit
def txt_gru_forward(x, params):
    S = x.shape[0]
    H = params["w_fc"].shape[1]
    args = (x,
            params["w_fc"], params["b_fc"], params["g_fc"], params["a_fc"],
            params["wih"], params["whh"], params["bih"], params["bhh"],
            params["w_reg"], params["b_reg"], params["g_reg"], params["a_reg"])

    return pl.pallas_call(
        txt_gru_kernel,
        out_shape=jax.ShapeDtypeStruct((S, H), jnp.float32),
        in_specs=[_VMEM] * len(args),
        out_specs=_VMEM,
        compiler_params=pltpu.CompilerParams(
            vmem_limit_bytes=_vmem_limit_bytes(*args)),
    )(*args)


# ---------------------------------------------------------------------------
# Deterministic parameter construction (gate-major GRU layout: r, z, n)
# ---------------------------------------------------------------------------
def make_params(key, input_dim, hidden_dim, num_layers):
    ks = jax.random.split(key, 4 + 4 * num_layers)
    H = hidden_dim

    w_fc = jax.random.normal(ks[0], (input_dim, H), jnp.float32) * jnp.sqrt(2.0 / input_dim)
    w_reg = jax.random.normal(ks[1], (H, H), jnp.float32) * jnp.sqrt(2.0 / H)
    b_fc = jnp.zeros((1, H), jnp.float32)
    b_reg = jnp.zeros((1, H), jnp.float32)
    g_fc = jnp.ones((1, H), jnp.float32)          # RMSNorm weight
    g_reg = jnp.ones((1, H), jnp.float32)
    a_fc = jnp.full((1, H), 0.25, jnp.float32)    # PReLU alpha (PyTorch default)
    a_reg = jnp.full((1, H), 0.25, jnp.float32)

    bound = 1.0 / jnp.sqrt(jnp.float32(H))
    wih, whh, bih, bhh = [], [], [], []
    for l in range(num_layers):
        k0, k1, k2, k3 = jax.random.split(ks[4 + l], 4)
        wih.append(jax.random.uniform(k0, (3, H, H), jnp.float32, -bound, bound))
        whh.append(jax.random.uniform(k1, (3, H, H), jnp.float32, -bound, bound))
        bih.append(jax.random.uniform(k2, (3, 1, H), jnp.float32, -bound, bound))
        bhh.append(jax.random.uniform(k3, (3, 1, H), jnp.float32, -bound, bound))

    return {
        "w_fc": w_fc, "b_fc": b_fc, "g_fc": g_fc, "a_fc": a_fc,
        "w_reg": w_reg, "b_reg": b_reg, "g_reg": g_reg, "a_reg": a_reg,
        "wih": jnp.stack(wih), "whh": jnp.stack(whh),    # (L, 3, H, H)
        "bih": jnp.stack(bih), "bhh": jnp.stack(bhh),    # (L, 3, 1, H)
    }


# ---------------------------------------------------------------------------
# Pure-JAX references for verification
# ---------------------------------------------------------------------------
def rmsnorm_ref(x, w):
    xf = x.astype(jnp.float32)
    ms = jnp.mean(xf * xf, axis=-1, keepdims=True)
    return (xf * lax.rsqrt(ms + EPS) * w.astype(jnp.float32)).astype(x.dtype)


def ref_forward(x, params):
    def rms_prelu(y, g, a):
        ms = jnp.mean(y * y, axis=-1, keepdims=True)
        out = y * lax.rsqrt(ms + EPS) * g
        return jnp.where(out >= 0, out, a * out)

    m = rms_prelu(x @ params["w_fc"] + params["b_fc"], params["g_fc"], params["a_fc"])
    S, H = m.shape
    L = params["wih"].shape[0]
    seq = m
    for l in range(L):
        Wr, Wz, Wn = params["wih"][l]
        Ur, Uz, Un = params["whh"][l]
        bir, biz, bin_ = params["bih"][l][:, 0, :]
        bhr, bhz, bhn = params["bhh"][l][:, 0, :]
        h = jnp.zeros((H,), jnp.float32)
        outs = []
        for t in range(S):
            r = jax.nn.sigmoid(seq[t] @ Wr + bir + h @ Ur + bhr)
            z = jax.nn.sigmoid(seq[t] @ Wz + biz + h @ Uz + bhz)
            n = jnp.tanh(seq[t] @ Wn + bin_ + r * (h @ Un + bhn))
            h = (1.0 - z) * n + z * h
            outs.append(h)
        seq = jnp.stack(outs)
    p = seq + m
    return rms_prelu(p @ params["w_reg"] + params["b_reg"],
                     params["g_reg"], params["a_reg"]) + m


if __name__ == "__main__":
    seq_len, input_dim, hidden_dim, num_layers = 8, 16, 32, 8

    key = jax.random.PRNGKey(0)
    kx, kp, kn, kw, kb = jax.random.split(key, 5)

    # --- standalone RMSNorm (the spec module), f32, small shape ---
    xn = jax.random.normal(kn, (seq_len, hidden_dim), jnp.float32)
    wn = jnp.ones((hidden_dim,), jnp.float32) + 0.1 * jax.random.normal(
        kw, (hidden_dim,), jnp.float32)
    yn = jax.block_until_ready(rmsnorm_forward(xn, wn))
    yn_ref = rmsnorm_ref(xn, wn)
    assert yn.shape == (seq_len, hidden_dim), yn.shape
    assert jnp.allclose(yn, yn_ref, atol=1e-5, rtol=1e-5), \
        float(jnp.max(jnp.abs(yn - yn_ref)))

    # --- standalone RMSNorm, bf16 I/O (f32 compute), multi-tile grid ---
    xb = jax.random.normal(kb, (128, 256), jnp.float32).astype(jnp.bfloat16)
    wb = (jnp.ones((256,), jnp.float32)).astype(jnp.bfloat16)
    yb = jax.block_until_ready(rmsnorm_forward(xb, wb, row_tile=64))   # grid=(2,)
    yb_ref = rmsnorm_ref(xb, wb)
    assert yb.dtype == jnp.bfloat16 and yb.shape == (128, 256)
    assert jnp.allclose(yb.astype(jnp.float32), yb_ref.astype(jnp.float32),
                        atol=2e-2, rtol=2e-2)

    # --- fused TXT_GRU forward ---
    x = jax.random.normal(kx, (seq_len, input_dim), jnp.float32)
    params = make_params(kp, input_dim, hidden_dim, num_layers)

    out = jax.block_until_ready(txt_gru_forward(x, params))
    ref = ref_forward(x, params)
    assert out.shape == (seq_len, hidden_dim), out.shape
    assert jnp.allclose(out, ref, atol=1e-4, rtol=1e-4), \
        float(jnp.max(jnp.abs(out - ref)))

    print("KERNEL_OK")
</pallas_src>

<mosaic_0001>
module attributes {stable_mosaic.version = 11 : i64} {
  func.func @rmsnorm_kernel(%arg0: i32, %arg1: memref<8x32xf32, #tpu.memory_space<vmem>>, %arg2: memref<1x32xf32, #tpu.memory_space<vmem>>, %arg3: memref<8x32xf32, #tpu.memory_space<vmem>>) attributes {dimension_semantics = [#tpu.dimension_semantics<parallel>], iteration_bounds = array<i64: 1>, scalar_prefetch = 0 : i64, scratch_operands = 0 : i64, tpu.core_type = #tpu.core_type<tc>, window_params = [{transform_indices = @transform_0, window_bounds = array<i64: 8, 32>}, {pipeline_mode = #tpu.pipeline_mode<synchronous>, transform_indices = @transform_1, window_bounds = array<i64: 1, 32>}, {transform_indices = @transform_2, window_bounds = array<i64: 8, 32>}]} {
    %c0 = arith.constant 0 : index
    %c0_0 = arith.constant 0 : index
    %0 = vector.load %arg1[%c0, %c0_0] : memref<8x32xf32, #tpu.memory_space<vmem>>, vector<8x32xf32>
    %c0_1 = arith.constant 0 : index
    %c0_2 = arith.constant 0 : index
    %1 = vector.load %arg2[%c0_1, %c0_2] : memref<1x32xf32, #tpu.memory_space<vmem>>, vector<1x32xf32>
    %2 = arith.mulf %0, %0 : vector<8x32xf32>
    %cst = arith.constant dense<0.000000e+00> : vector<8xf32>
    %3 = vector.multi_reduction <add>, %2, %cst [1] : vector<8x32xf32> to vector<8xf32>
    %4 = vector.shape_cast %3 : vector<8xf32> to vector<8x1xf32>
    %cst_3 = arith.constant 3.125000e-02 : f32
    %5 = vector.broadcast %cst_3 : f32 to vector<8x1xf32>
    %6 = arith.mulf %4, %5 : vector<8x1xf32>
    %cst_4 = arith.constant 9.99999997E-7 : f32
    %7 = vector.broadcast %cst_4 : f32 to vector<8x1xf32>
    %8 = arith.addf %6, %7 : vector<8x1xf32>
    %9 = math.rsqrt %8 : vector<8x1xf32>
    %10 = vector.broadcast %9 : vector<8x1xf32> to vector<8x32xf32>
    %11 = arith.mulf %0, %10 : vector<8x32xf32>
    %12 = vector.broadcast %1 : vector<1x32xf32> to vector<8x32xf32>
    %13 = arith.mulf %11, %12 : vector<8x32xf32>
    %c0_5 = arith.constant 0 : index
    %c0_6 = arith.constant 0 : index
    %14 = vector.load %arg3[%c0_5, %c0_6] : memref<8x32xf32, #tpu.memory_space<vmem>>, vector<8x32xf32>
    tpu.vector_store %arg3[%c0_5, %c0_6], %13 {strides = array<i32>} : memref<8x32xf32, #tpu.memory_space<vmem>>, vector<8x32xf32>,
    return
  }
  func.func @transform_0(%arg0: i32) -> (i32, i32) {
    %c0_i32 = arith.constant 0 : i32
    %c0_i32_0 = arith.constant 0 : i32
    return %arg0, %c0_i32 : i32, i32
  }
  func.func @transform_1(%arg0: i32) -> (i32, i32) {
    %c0_i32 = arith.constant 0 : i32
    %c0_i32_0 = arith.constant 0 : i32
    %c0_i32_1 = arith.constant 0 : i32
    return %c0_i32, %c0_i32_0 : i32, i32
  }
  func.func @transform_2(%arg0: i32) -> (i32, i32) {
    %c0_i32 = arith.constant 0 : i32
    %c0_i32_0 = arith.constant 0 : i32
    return %arg0, %c0_i32 : i32, i32
  }
}

</mosaic_0001>

<llo_original>
// kernel: rmsnorm_forward.1
$region0: #{rmsnorm_forward.1}
  #allocation0 [shape = 'u32[]', space=smem, size = 0x4, offset = 0x4, fixed_abs, tag = 'smem constant byte address 0x4 - core index']
  #allocation1 [shape = 'u32[144,128]{1,0:T(1,128)}', space=vmem, size = 0x12000, scoped, tag = 'internal scratch']
  %s0 = inlined_call_operand.hbm [shape: f32[8,32], index: 0, kind: input, shape index: {}]
  %s1 = inlined_call_operand.vmem [shape: f32[1,32], index: 1, kind: input, shape index: {}]
  %s2 = inlined_call_operand.hbm [shape: f32[8,32], index: 2, kind: output, shape index: {}]
  %s3 = sld [smem:[#allocation0]]
  $region22: #{rmsnorm_forward.1} parent=0
    _
  %s5 = ssub.s32 1, %s3
  %s6 = scalar_select 0, %s5, %s3
  $region1: #{rmsnorm_forward.1} parent=0
    #allocation2 [shape = 'u8[4096]{0}', space=vmem, size = 0x1000, scoped, tag = 'input window, operand 0, single buffered']
    #allocation3 [shape = 's32[1]{0}', space=sflag, size = 0x4, scoped, tag = 'scoped memory for rmsnorm_forward.1']
    #allocation4 [shape = 's32[1]{0}', space=sflag, size = 0x4, scoped, tag = 'scoped memory for rmsnorm_forward.1']
    #allocation5 [shape = 'u8[4096]{0}', space=vmem, size = 0x1000, scoped, tag = 'output window, operand 0, single buffered']
    %7 = vsyncpa [#allocation3], 0
    %8 = vsyncpa [#allocation4], 0
    // Predicated region
    $region2: #{rmsnorm_forward.1} parent=1 // pred_check
      _
    $region3: #{rmsnorm_forward.1} parent=1 // pred_check_branch
      %10 = sbr.rel (0) target = $region5
    $region4: #{rmsnorm_forward.1} parent=1 // pred_region
      %s12 = ssub.s32 128, 128
      %13 = vsyncadd [#allocation3], %s12
      %s15 = sshll.u32 [#allocation2], 4
      %s16 = int_to_ptr.vmem [resolvable:$true] %s15
      %18 = dma.hbm_to_vmem [thread:$0]  %s0, 128, %s16, [#allocation3]
    $region5: #{rmsnorm_forward.1} parent=1 // pred_fallthru
      _
    // Predicated region
    $region6: #{rmsnorm_forward.1} parent=1 // pred_check
      _
    $region7: #{rmsnorm_forward.1} parent=1 // pred_check_branch
      %20 = sbr.rel (0) target = $region9
    $region8: #{rmsnorm_forward.1} parent=1 // pred_region
      _
    $region9: #{rmsnorm_forward.1} parent=1 // pred_fallthru
      _
    // Predicated region
    $region10: #{rmsnorm_forward.1} parent=1 // pred_check
      _
    $region11: #{rmsnorm_forward.1} parent=1 // pred_check_branch
      %22 = sbr.rel (0) target = $region13
    $region12: #{rmsnorm_forward.1} parent=1 // pred_region
      %23 = dma.done [#allocation3], 128
    $region13: #{rmsnorm_forward.1} parent=1 // pred_fallthru
      _
    %v24 = vld [vmem:[#allocation2] sm:$0xff]
    %v25 = vld [vmem:[%s1] sm:$0x1]
    %v26 = vmul.f32 %v24, %v24
    %vm27 = vcmask 261120
    %v28 = vsel %vm27, %v26, 0.0
    %29 = vadd.xlane.f32.xlu0 %v28
    %v30 = vpop.xlane.xlu0 %29
    %v31 = vmul.f32 %v30, 0.03125
    %v32 = vadd.f32 %v31, 1e-06
    %v33 = vrsqrt.pop %v32
    %v34 = vmul.f32 %v24, %v33
    %v36 = vlaneseq
    %v37 = vshrl.u32 %v36, 7
    %v38 = vsub.s32 0, %v37
    %v39 = vrot.slane %v25, %v38
    %v41 = vmul.f32 %v34, %v39
    %42 = vst.msk [vmem:[#allocation5] sm:$0xff] %vm27, %v41
    // Predicated region
    $region14: #{rmsnorm_forward.1} parent=1 // pred_check
      _
    $region15: #{rmsnorm_forward.1} parent=1 // pred_check_branch
      %44 = sbr.rel (0) target = $region17
    $region16: #{rmsnorm_forward.1} parent=1 // pred_region
      %s46 = ssub.s32 128, 128
      %47 = vsyncadd [#allocation4], %s46
      %s49 = sshll.u32 [#allocation5], 4
      %s50 = int_to_ptr.vmem [resolvable:$true] %s49
      %52 = dma.vmem_to_hbm [thread:$0]  %s50, 128, %s2, [#allocation4]
    $region17: #{rmsnorm_forward.1} parent=1 // pred_fallthru
      _
    // Predicated region
    $region18: #{rmsnorm_forward.1} parent=1 // pred_check
      _
    $region19: #{rmsnorm_forward.1} parent=1 // pred_check_branch
      %54 = sbr.rel (0) target = $region21
    $region20: #{rmsnorm_forward.1} parent=1 // pred_region
      %55 = dma.done [#allocation4], 128
    $region21: #{rmsnorm_forward.1} parent=1 // pred_fallthru
      _
    %56 = vsyncpa [#allocation3], 1
    %57 = vsyncpa [#allocation4], 1

</llo_original>
